<compile_context>
chip_gen: v7x
topology: tpu7x:2x2x1
jax: 0.10.0
libtpu: 0.0.40
codegen_flags: <defaults>
</compile_context>

<pallas_src>
import jax
import jax.numpy as jnp
from jax.experimental import pallas as pl
from jax.experimental.pallas import tpu as pltpu


def _round_up(n, m):
    return ((n + m - 1) // m) * m


def _sigmoid(x):
    # sigmoid(x) = 0.5 * (tanh(x/2) + 1): a single EUP op (tanh) instead of
    # exp + reciprocal.  Numerically equivalent to jax.nn.sigmoid in f32.
    return 0.5 * (jnp.tanh(0.5 * x) + 1.0)


def mlp_kernel(x_ref, w1_ref, b1_ref, w2_ref, b2_ref, o_ref):
    # Layer 1: (tb, 100) @ (100, 80) on the MXU with f32 accumulation.  The
    # cast to the MXU dtype (bf16 by default) happens here, so HBM only ever
    # carries the original unpadded x.
    x = x_ref[...].astype(w1_ref.dtype)
    h = jnp.dot(x, w1_ref[...], preferred_element_type=jnp.float32)
    h = _sigmoid(h + b1_ref[...])                       # f32 VPU + EUP
    # Layer 2: hidden(80) -> 1 as a VPU multiply + cross-lane reduce (XLU),
    # avoiding an N=1 MXU pass.  Epilogue stays in f32 (v5e has no bf16 EUP).
    y = jnp.sum(h * w2_ref[...], axis=-1, keepdims=True) + b2_ref[...]
    o_ref[...] = _sigmoid(y).astype(o_ref.dtype)


def ann_forward(x, w1, b1, w2, b2, *, tile_b=8192, compute_dtype=jnp.bfloat16):
    """Forward pass of ANN.

    x: (B, 100); w1: (100, 80); b1: (80,); w2: (80, 1); b2: (1,).
    Returns (B, 1) float32.
    """
    B, f_in = x.shape
    hid = w1.shape[1]
    assert w1.shape[0] == f_in and w2.shape == (hid, 1) and b1.shape == (hid,)

    # Batch tile: multiple of 8 (sublanes), capped at tile_b, and sized so the
    # grid has >= 2 tiles whenever B allows (v7x has 2 TensorCores; a grid of
    # 1 also disables the double-buffered pipeline).  The ragged edge tile may
    # read undefined rows past B; its out-of-bounds writes are masked by
    # Pallas and there are no cross-row reductions, so the result is exact.
    tb = min(int(tile_b), _round_up(-(-B // 2), 8))
    tb = max(8, _round_up(tb, 8))
    grid = (pl.cdiv(B, tb),)

    # Small, VMEM-resident operands (constant index_maps -> DMA'd once).
    w1_c = w1.astype(compute_dtype)                     # (100, 80)
    b1_r = b1.reshape(1, hid).astype(jnp.float32)       # (1, 80)
    w2_r = w2.astype(jnp.float32).reshape(1, hid)       # (1, 80)
    b2_r = b2.reshape(1, 1).astype(jnp.float32)         # (1, 1)

    # VMEM footprint: double-buffered x tiles + double-buffered (tb, 1) f32
    # output blocks (both lane-padded to 128 by VMEM tiling) + tiny weights.
    x_row_bytes = 128 * x.dtype.itemsize
    out_row_bytes = 128 * 4
    vmem_est = 2 * tb * (x_row_bytes + out_row_bytes) + (2 << 20)
    vmem_limit = int(min(64 << 20, max(32 << 20, vmem_est)))

    n_rows = grid[0] * tb
    cost = pl.CostEstimate(
        flops=2 * n_rows * (f_in * hid + hid),
        transcendentals=n_rows * (hid + 1),
        bytes_accessed=(B * f_in * x.dtype.itemsize                   # streamed x (unpadded)
                        + f_in * hid * jnp.dtype(compute_dtype).itemsize  # w1 (loaded once)
                        + (2 * hid + 1) * 4                           # b1, w2 row, b2
                        + B * 4),                                     # output
    )

    out = pl.pallas_call(
        mlp_kernel,
        out_shape=jax.ShapeDtypeStruct((B, 1), jnp.float32),
        grid_spec=pltpu.PrefetchScalarGridSpec(
            num_scalar_prefetch=0,
            grid=grid,
            in_specs=[
                pl.BlockSpec((tb, f_in), lambda i: (i, 0)),    # x tile (streamed)
                pl.BlockSpec((f_in, hid), lambda i: (0, 0)),   # w1   (resident)
                pl.BlockSpec((1, hid), lambda i: (0, 0)),      # b1   (resident)
                pl.BlockSpec((1, hid), lambda i: (0, 0)),      # w2^T (resident)
                pl.BlockSpec((1, 1), lambda i: (0, 0)),        # b2   (resident)
            ],
            out_specs=pl.BlockSpec((tb, 1), lambda i: (i, 0)),
        ),
        compiler_params=pltpu.CompilerParams(
            dimension_semantics=("parallel",),
            vmem_limit_bytes=vmem_limit,
        ),
        cost_estimate=cost,
    )(x, w1_c, b1_r, w2_r, b2_r)
    return out


def init_params(key):
    """Deterministic init mimicking nn.Linear's U(-1/sqrt(fan_in), 1/sqrt(fan_in))."""
    k1, k2, k3, k4 = jax.random.split(key, 4)
    bound1 = 1.0 / jnp.sqrt(100.0)
    bound2 = 1.0 / jnp.sqrt(80.0)
    w1 = jax.random.uniform(k1, (100, 80), jnp.float32, -bound1, bound1)
    b1 = jax.random.uniform(k2, (80,), jnp.float32, -bound1, bound1)
    w2 = jax.random.uniform(k3, (80, 1), jnp.float32, -bound2, bound2)
    b2 = jax.random.uniform(k4, (1,), jnp.float32, -bound2, bound2)
    return w1, b1, w2, b2


if __name__ == "__main__":
    key = jax.random.PRNGKey(0)
    kx, kp = jax.random.split(key)
    batch = 8
    x = jax.random.normal(kx, (batch, 100), jnp.float32)
    w1, b1, w2, b2 = init_params(kp)

    ref = jax.nn.sigmoid(jax.nn.sigmoid(x @ w1 + b1) @ w2 + b2)

    # f32 compute path: masking of the ragged 100/80 lanes must be exact.
    out_f32 = ann_forward(x, w1, b1, w2, b2, compute_dtype=jnp.float32)
    jax.block_until_ready(out_f32)
    assert out_f32.shape == (batch, 1)
    assert jnp.allclose(out_f32, ref, atol=1e-5), "f32 mismatch vs reference"

    # bf16 MXU path (production config): loose tolerance for bf16 operands.
    out_bf16 = ann_forward(x, w1, b1, w2, b2)
    jax.block_until_ready(out_bf16)
    assert out_bf16.shape == (batch, 1)
    assert jnp.allclose(out_bf16, ref, atol=5e-3), "bf16 mismatch vs reference"

    # Multi-tile grid with a ragged edge tile (B=50, tile=16 -> grid of 4,
    # last tile has only 2 valid rows -> exercises masked edge writes).
    x2 = jax.random.normal(jax.random.PRNGKey(1), (50, 100), jnp.float32)
    ref2 = jax.nn.sigmoid(jax.nn.sigmoid(x2 @ w1 + b1) @ w2 + b2)
    out2 = ann_forward(x2, w1, b1, w2, b2, tile_b=16, compute_dtype=jnp.float32)
    jax.block_until_ready(out2)
    assert out2.shape == (50, 1)
    assert jnp.allclose(out2, ref2, atol=1e-5), "multi-tile mismatch vs reference"

    print("KERNEL_OK")
</pallas_src>

<mosaic_0001>
module attributes {stable_mosaic.version = 11 : i64} {
  func.func @mlp_kernel(%arg0: i32, %arg1: memref<8x100xf32, #tpu.memory_space<vmem>>, %arg2: memref<100x80xf32, #tpu.memory_space<vmem>>, %arg3: memref<1x80xf32, #tpu.memory_space<vmem>>, %arg4: memref<1x80xf32, #tpu.memory_space<vmem>>, %arg5: memref<1x1xf32, #tpu.memory_space<vmem>>, %arg6: memref<8x1xf32, #tpu.memory_space<vmem>>) attributes {dimension_semantics = [#tpu.dimension_semantics<parallel>], iteration_bounds = array<i64: 1>, scalar_prefetch = 0 : i64, scratch_operands = 0 : i64, tpu.core_type = #tpu.core_type<tc>, window_params = [{transform_indices = @transform_0, window_bounds = array<i64: 8, 100>}, {pipeline_mode = #tpu.pipeline_mode<synchronous>, transform_indices = @transform_1, window_bounds = array<i64: 100, 80>}, {pipeline_mode = #tpu.pipeline_mode<synchronous>, transform_indices = @transform_2, window_bounds = array<i64: 1, 80>}, {pipeline_mode = #tpu.pipeline_mode<synchronous>, transform_indices = @transform_3, window_bounds = array<i64: 1, 80>}, {pipeline_mode = #tpu.pipeline_mode<synchronous>, transform_indices = @transform_4, window_bounds = array<i64: 1, 1>}, {transform_indices = @transform_5, window_bounds = array<i64: 8, 1>}]} {
    %c0 = arith.constant 0 : index
    %c0_0 = arith.constant 0 : index
    %0 = vector.load %arg1[%c0, %c0_0] : memref<8x100xf32, #tpu.memory_space<vmem>>, vector<8x100xf32>
    %c0_1 = arith.constant 0 : index
    %c0_2 = arith.constant 0 : index
    %1 = vector.load %arg2[%c0_1, %c0_2] : memref<100x80xf32, #tpu.memory_space<vmem>>, vector<100x80xf32>
    %cst = arith.constant dense<0.000000e+00> : vector<8x80xf32>
    %2 = tpu.matmul %0, %1, %cst {dimension_numbers = #tpu.dot_dimension_numbers<[1], [0], [0], [1], [0, 0, 1, 1], [], []>} : vector<8x100xf32>, vector<100x80xf32>, vector<8x80xf32> -> vector<8x80xf32>
    %c0_3 = arith.constant 0 : index
    %c0_4 = arith.constant 0 : index
    %3 = vector.load %arg3[%c0_3, %c0_4] : memref<1x80xf32, #tpu.memory_space<vmem>>, vector<1x80xf32>
    %4 = vector.broadcast %3 : vector<1x80xf32> to vector<8x80xf32>
    %5 = arith.addf %2, %4 : vector<8x80xf32>
    %cst_5 = arith.constant 5.000000e-01 : f32
    %6 = vector.broadcast %cst_5 : f32 to vector<8x80xf32>
    %7 = arith.mulf %6, %5 : vector<8x80xf32>
    %8 = math.tanh %7 : vector<8x80xf32>
    %cst_6 = arith.constant 1.000000e+00 : f32
    %9 = vector.broadcast %cst_6 : f32 to vector<8x80xf32>
    %10 = arith.addf %8, %9 : vector<8x80xf32>
    %cst_7 = arith.constant 5.000000e-01 : f32
    %11 = vector.broadcast %cst_7 : f32 to vector<8x80xf32>
    %12 = arith.mulf %11, %10 : vector<8x80xf32>
    %c0_8 = arith.constant 0 : index
    %c0_9 = arith.constant 0 : index
    %13 = vector.load %arg4[%c0_8, %c0_9] : memref<1x80xf32, #tpu.memory_space<vmem>>, vector<1x80xf32>
    %14 = vector.broadcast %13 : vector<1x80xf32> to vector<8x80xf32>
    %15 = arith.mulf %12, %14 : vector<8x80xf32>
    %cst_10 = arith.constant dense<0.000000e+00> : vector<8xf32>
    %16 = vector.multi_reduction <add>, %15, %cst_10 [1] : vector<8x80xf32> to vector<8xf32>
    %17 = vector.shape_cast %16 : vector<8xf32> to vector<8x1xf32>
    %c0_11 = arith.constant 0 : index
    %c0_12 = arith.constant 0 : index
    %18 = vector.load %arg5[%c0_11, %c0_12] : memref<1x1xf32, #tpu.memory_space<vmem>>, vector<1x1xf32>
    %19 = vector.broadcast %18 : vector<1x1xf32> to vector<8x1xf32>
    %20 = arith.addf %17, %19 : vector<8x1xf32>
    %cst_13 = arith.constant 5.000000e-01 : f32
    %21 = vector.broadcast %cst_13 : f32 to vector<8x1xf32>
    %22 = arith.mulf %21, %20 : vector<8x1xf32>
    %23 = math.tanh %22 : vector<8x1xf32>
    %cst_14 = arith.constant 1.000000e+00 : f32
    %24 = vector.broadcast %cst_14 : f32 to vector<8x1xf32>
    %25 = arith.addf %23, %24 : vector<8x1xf32>
    %cst_15 = arith.constant 5.000000e-01 : f32
    %26 = vector.broadcast %cst_15 : f32 to vector<8x1xf32>
    %27 = arith.mulf %26, %25 : vector<8x1xf32>
    %c0_16 = arith.constant 0 : index
    %c0_17 = arith.constant 0 : index
    %28 = vector.load %arg6[%c0_16, %c0_17] : memref<8x1xf32, #tpu.memory_space<vmem>>, vector<8x1xf32>
    tpu.vector_store %arg6[%c0_16, %c0_17], %27 {strides = array<i32>} : memref<8x1xf32, #tpu.memory_space<vmem>>, vector<8x1xf32>,
    return
  }
  func.func @transform_0(%arg0: i32) -> (i32, i32) {
    %c0_i32 = arith.constant 0 : i32
    %c0_i32_0 = arith.constant 0 : i32
    return %arg0, %c0_i32 : i32, i32
  }
  func.func @transform_1(%arg0: i32) -> (i32, i32) {
    %c0_i32 = arith.constant 0 : i32
    %c0_i32_0 = arith.constant 0 : i32
    %c0_i32_1 = arith.constant 0 : i32
    return %c0_i32, %c0_i32_0 : i32, i32
  }
  func.func @transform_2(%arg0: i32) -> (i32, i32) {
    %c0_i32 = arith.constant 0 : i32
    %c0_i32_0 = arith.constant 0 : i32
    %c0_i32_1 = arith.constant 0 : i32
    return %c0_i32, %c0_i32_0 : i32, i32
  }
  func.func @transform_3(%arg0: i32) -> (i32, i32) {
    %c0_i32 = arith.constant 0 : i32
    %c0_i32_0 = arith.constant 0 : i32
    %c0_i32_1 = arith.constant 0 : i32
    return %c0_i32, %c0_i32_0 : i32, i32
  }
  func.func @transform_4(%arg0: i32) -> (i32, i32) {
    %c0_i32 = arith.constant 0 : i32
    %c0_i32_0 = arith.constant 0 : i32
    %c0_i32_1 = arith.constant 0 : i32
    return %c0_i32, %c0_i32_0 : i32, i32
  }
  func.func @transform_5(%arg0: i32) -> (i32, i32) {
    %c0_i32 = arith.constant 0 : i32
    %c0_i32_0 = arith.constant 0 : i32
    return %arg0, %c0_i32 : i32, i32
  }
}

</mosaic_0001>

<llo_original>
// kernel: tpu_custom_call.1
$region0: #{tpu_custom_call.1}
  #allocation0 [shape = 'u32[]', space=smem, size = 0x4, offset = 0x4, fixed_abs, tag = 'smem constant byte address 0x4 - core index']
  #allocation1 [shape = 'u32[144,128]{1,0:T(1,128)}', space=vmem, size = 0x12000, scoped, tag = 'internal scratch']
  #allocation2 [shape = 'f32[1,1]{1,0:T(1,128)S(1)}', space=vmem, size = 0x200, scoped, tag = 'scoped memory for tpu_custom_call.1']
  %s0 = inlined_call_operand.vmem [shape: f32[8,100], index: 0, kind: input, shape index: {}]
  %s1 = inlined_call_operand.vmem [shape: f32[100,80], index: 1, kind: input, shape index: {}]
  %s2 = inlined_call_operand.vmem [shape: f32[1,80], index: 2, kind: input, shape index: {}]
  %s3 = inlined_call_operand.vmem [shape: f32[1,80], index: 3, kind: input, shape index: {}]
  %s4 = inlined_call_operand.<no memory space> [shape: f32[1,1], index: 4, kind: input, shape index: {}]
  %s5 = inlined_call_operand.vmem [shape: f32[8,1], index: 5, kind: output, shape index: {}]
  %s6 = sld [smem:[#allocation0]]
  $region30: #{tpu_custom_call.1} parent=0
    _
  %s8 = ssub.s32 1, %s6
  %s9 = scalar_select 0, %s8, %s6
  %v10 = vstv %s4
  %11 = vst [vmem:[#allocation2] sm:$0x1] %v10
  // Predicated region
  $region2: #{tpu_custom_call.1} parent=0 // pred_check
    _
  $region3: #{tpu_custom_call.1} parent=0 // pred_check_branch
    %13 = sbr.rel (0) target = $region5
  $region4: #{tpu_custom_call.1} parent=0 // pred_region
    _
  $region5: #{tpu_custom_call.1} parent=0 // pred_fallthru
    _
  // Predicated region
  $region6: #{tpu_custom_call.1} parent=0 // pred_check
    _
  $region7: #{tpu_custom_call.1} parent=0 // pred_check_branch
    %15 = sbr.rel (0) target = $region9
  $region8: #{tpu_custom_call.1} parent=0 // pred_region
    _
  $region9: #{tpu_custom_call.1} parent=0 // pred_fallthru
    _
  // Predicated region
  $region10: #{tpu_custom_call.1} parent=0 // pred_check
    _
  $region11: #{tpu_custom_call.1} parent=0 // pred_check_branch
    %17 = sbr.rel (0) target = $region13
  $region12: #{tpu_custom_call.1} parent=0 // pred_region
    _
  $region13: #{tpu_custom_call.1} parent=0 // pred_fallthru
    _
  // Predicated region
  $region14: #{tpu_custom_call.1} parent=0 // pred_check
    _
  $region15: #{tpu_custom_call.1} parent=0 // pred_check_branch
    %19 = sbr.rel (0) target = $region17
  $region16: #{tpu_custom_call.1} parent=0 // pred_region
    _
  $region17: #{tpu_custom_call.1} parent=0 // pred_fallthru
    _
  // Predicated region
  $region18: #{tpu_custom_call.1} parent=0 // pred_check
    _
  $region19: #{tpu_custom_call.1} parent=0 // pred_check_branch
    %21 = sbr.rel (0) target = $region21
  $region20: #{tpu_custom_call.1} parent=0 // pred_region
    _
  $region21: #{tpu_custom_call.1} parent=0 // pred_fallthru
    _
  %v22 = vld [vmem:[%s0] sm:$0xff]
  %v23 = vld [vmem:[%s1] sm:$0xff]
  %v24 = vld [vmem:[%s1 + $0x8] sm:$0xff]
  %v25 = vld [vmem:[%s1 + $0x10] sm:$0xff]
  %v26 = vld [vmem:[%s1 + $0x18] sm:$0xff]
  %v27 = vld [vmem:[%s1 + $0x20] sm:$0xff]
  %v28 = vld [vmem:[%s1 + $0x28] sm:$0xff]
  %v29 = vld [vmem:[%s1 + $0x30] sm:$0xff]
  %v30 = vld [vmem:[%s1 + $0x38] sm:$0xff]
  %v31 = vld [vmem:[%s1 + $0x40] sm:$0xff]
  %v32 = vld [vmem:[%s1 + $0x48] sm:$0xff]
  %v33 = vld [vmem:[%s1 + $0x50] sm:$0xff]
  %v34 = vld [vmem:[%s1 + $0x58] sm:$0xff]
  %v35 = vld [vmem:[%s1 + $0x60] sm:$0xf]
  %v36 = vld [vmem:[%s2] sm:$0x1]
  %v38 = vlaneseq
  %v39 = vshrl.u32 %v38, 7
  %v40 = vsub.s32 0, %v39
  %v41 = vrot.slane %v36, %v40
  %vm43 = vcmask 818176
  %v45 = vsel %vm43, %v22, 0
  %vm47 = vcmask 1043456
  %v49 = vsel %vm47, %v35, 0
  %51 = vmatprep.subr.mxu0 0.0
  %52 = vmatpush1.msra.mxu0 %v23
  %53 = vmatprep.subr.mxu0 0.0
  %54 = vmatpush1.msra.mxu0 %v24
  %55 = vmatprep.subr.mxu0 0.0
  %56 = vmatpush1.msra.mxu0 %v25
  %57 = vmatprep.subr.mxu0 0.0
  %58 = vmatpush1.msra.mxu0 %v26
  %59 = vmatprep.subr.mxu0 0.0
  %60 = vmatpush1.msra.mxu0 %v27
  %61 = vmatprep.subr.mxu0 0.0
  %62 = vmatpush1.msra.mxu0 %v28
  %63 = vmatprep.subr.mxu0 0.0
  %64 = vmatpush1.msra.mxu0 %v29
  %65 = vmatprep.subr.mxu0 0.0
  %66 = vmatpush1.msra.mxu0 %v30
  %67 = vmatprep.subr.mxu0 0.0
  %68 = vmatpush1.msra.mxu0 %v31
  %69 = vmatprep.subr.mxu0 0.0
  %70 = vmatpush1.msra.mxu0 %v32
  %71 = vmatprep.subr.mxu0 0.0
  %72 = vmatpush1.msra.mxu0 %v33
  %73 = vmatprep.subr.mxu0 0.0
  %74 = vmatpush1.msra.mxu0 %v34
  %75 = vmatprep.subr.mxu0 0.0
  %76 = vmatpush1.msra.mxu0 %v49
  %77 = vmatprep.subr.mxu0 0.0
  %78 = vmatpush1.msra.mxu0 0.0
  %79 = vmatprep.subr.mxu0 0.0
  %80 = vmatpush1.msra.mxu0 0.0
  %81 = vmatprep.subr.mxu0 0.0
  %82 = vmatpush1.msra.mxu0 0.0
  %83 = vmatprep.subr.mxu0 0.0
  %84 = vmatpush1.msra.mxu0 0.0
  %85 = vmatprep.subr.mxu0 0.0
  %86 = vmatpush1.msra.mxu0 0.0
  %87 = vmatprep.subr.mxu0 0.0
  %88 = vmatpush1.msra.mxu0 0.0
  %89 = vmatprep.subr.mxu0 0.0
  %90 = vmatpush1.msra.mxu0 0.0
  %91 = vmatprep.subr.mxu0 0.0
  %92 = vmatpush1.msra.mxu0 0.0
  %93 = vmatprep.subr.mxu0 0.0
  %94 = vmatpush1.msra.mxu0 0.0
  %95 = vmatprep.subr.mxu0 0.0
  %96 = vmatpush1.msra.mxu0 0.0
  %97 = vmatprep.subr.mxu0 0.0
  %98 = vmatpush1.msra.mxu0 0.0
  %99 = vmatprep.subr.mxu0 0.0
  %100 = vmatpush1.msra.mxu0 0.0
  %101 = vmatprep.subr.mxu0 0.0
  %102 = vmatpush1.msra.mxu0 0.0
  %103 = vmatprep.subr.mxu0 0.0
  %104 = vmatpush1.msra.mxu0 0.0
  %105 = vmatprep.subr.mxu0 0.0
  %106 = vmatpush1.msra.mxu0 0.0
  %107 = vmatprep.subr.mxu0 0.0
  %108 = vmatpush1.msra.mxu0 0.0
  %109 = vmatprep.subr.mxu0 0.0
  %110 = vmatpush1.msra.mxu0 0.0
  %111 = vmatprep.subr.mxu0 0.0
  %112 = vmatpush1.msra.mxu0 0.0
  %113 = vmatprep.subr.mxu0 0.0
  %114 = vmatpush1.msra.mxu0 0.0
  %115 = vmatprep.mubr.f32.mxu0 0.0
  %116 = vmatmul.mubr.f32.gmra.mrb[0].mxu0 %v45
  %v117 = vpop.f32.mrb[0].mxu0
  %v118 = vadd.f32 %v41, %v117
  %v119 = vpop.f32.mrb[0].mxu0
  %120 = vdwg.mxu0
  %v121 = vmul.f32 %v118, 0.5
  %v122 = vtanh.pop %v121
  %v123 = vadd.f32 %v122, 1.0
  %v124 = vmul.f32 %v123, 0.5
  %v125 = vld [vmem:[%s3] sm:$0x1]
  %v127 = vlaneseq
  %v128 = vshrl.u32 %v127, 7
  %v129 = vsub.s32 0, %v128
  %v130 = vrot.slane %v125, %v129
  %v132 = vmul.f32 %v124, %v130
  %vm133 = vcmask 654336
  %v134 = vsel %vm133, %v132, 0.0
  %135 = vadd.xlane.f32.xlu0 %v134
  %v136 = vpop.xlane.xlu0 %135
  %v137 = vld [vmem:[#allocation2] sm:$0x1]
  %v139 = vlaneseq
  %v140 = vshrl.u32 %v139, 7
  %v141 = vsub.s32 0, %v140
  %v142 = vrot.slane %v137, %v141
  %v144 = vadd.f32 %v136, %v142
  %v145 = vmul.f32 %v144, 0.5
  %v146 = vtanh.pop %v145
  %v147 = vadd.f32 %v146, 1.0
  %v148 = vmul.f32 %v147, 0.5
  %vm149 = vcmask 7168
  %150 = vst.msk [vmem:[%s5] sm:$0xff] %vm149, %v148
  // Predicated region
  $region22: #{tpu_custom_call.1} parent=0 // pred_check
    _
  $region23: #{tpu_custom_call.1} parent=0 // pred_check_branch
    %152 = sbr.rel (0) target = $region25
  $region24: #{tpu_custom_call.1} parent=0 // pred_region
    _
  $region25: #{tpu_custom_call.1} parent=0 // pred_fallthru
    _
  // Predicated region
  $region26: #{tpu_custom_call.1} parent=0 // pred_check
    _
  $region27: #{tpu_custom_call.1} parent=0 // pred_check_branch
    %154 = sbr.rel (0) target = $region29
  $region28: #{tpu_custom_call.1} parent=0 // pred_region
    _
  $region29: #{tpu_custom_call.1} parent=0 // pred_fallthru
    _

</llo_original>
